<compile_context>
chip_gen: v7x
topology: tpu7x:2x2x1
jax: 0.10.0
libtpu: 0.0.40
codegen_flags: <defaults>
</compile_context>

<pallas_src>
import math
import jax
import jax.numpy as jnp
from jax import lax
from jax.experimental import pallas as pl
from jax.experimental.pallas import tpu as pltpu


def _gelu_exact(x):
    # nn.GELU() default (approximate='none'): 0.5*x*(1+erf(x/sqrt(2)))
    return 0.5 * x * (1.0 + lax.erf(x * (1.0 / math.sqrt(2.0))))


def dino_head_kernel(x_ref, w1_ref, b1_ref, w2_ref, b2_ref, w3_ref, b3_ref,
                     wl_ref, o_ref, h_all):
    # Grid: (row_groups [parallel], out-col tiles [arbitrary],
    #        row tiles per group [arbitrary]).
    g = pl.program_id(0)
    j = pl.program_id(1)
    r = pl.program_id(2)
    tm = o_ref.shape[0]
    rows_per_group = pl.num_programs(2)
    row0 = pl.multiple_of((g * rows_per_group + r) * tm, tm)

    # MLP + L2 row-normalize: only on the first out-column tile of each row
    # tile.  Result cached (bf16) in the persistent VMEM scratch h_all.
    # NOTE: depends on the column axis (axis 1) staying "arbitrary"/sequential.
    @pl.when(j == 0)
    def _():
        x = x_ref[...]                                   # bf16 (cast in wrapper)
        h = jnp.dot(x, w1_ref[...],
                    preferred_element_type=jnp.float32) + b1_ref[...]
        h = _gelu_exact(h)
        h = jnp.dot(h.astype(jnp.bfloat16), w2_ref[...],
                    preferred_element_type=jnp.float32) + b2_ref[...]
        h = _gelu_exact(h)
        h = jnp.dot(h.astype(jnp.bfloat16), w3_ref[...],
                    preferred_element_type=jnp.float32) + b3_ref[...]
        # F.normalize(x, dim=-1, p=2): x / clamp_min(||x||, 1e-12)
        #   == x * rsqrt(clamp_min(||x||^2, 1e-24))
        inv = lax.rsqrt(jnp.maximum(jnp.sum(h * h, axis=-1, keepdims=True),
                                    1e-24))
        h_all[pl.ds(row0, tm), :] = (h * inv).astype(h_all.dtype)

    # Streaming last-layer matmul over one output-column tile.  The w_last
    # tile index depends only on j, so it is DMA'd from HBM once per row group.
    o_ref[...] = jnp.dot(h_all[pl.ds(row0, tm), :], wl_ref[...],
                         preferred_element_type=jnp.float32).astype(o_ref.dtype)


def prepare_params(raw):
    """Fold weight-norm into a single matrix and cast matmul weights to bf16.

    weight_norm last layer: W = g * v / ||v|| (norm over PyTorch dim != 0).
    v is stored transposed here -> normalize each column; g == 1.
    """
    v = raw["v_t"]                                              # (bneck, out)
    col_norm = jnp.sqrt(jnp.sum(v * v, axis=0, keepdims=True))  # (1, out)
    w_last = v * (raw["g"] / col_norm)
    return {
        "w1_t": raw["w1_t"].astype(jnp.bfloat16),
        "b1": raw["b1"],
        "w2_t": raw["w2_t"].astype(jnp.bfloat16),
        "b2": raw["b2"],
        "w3_t": raw["w3_t"].astype(jnp.bfloat16),
        "b3": raw["b3"],
        "w_last_t": w_last.astype(jnp.bfloat16),
    }


def _vmem_plan_bytes(N, in_dim, hidden, bneck, to, tm, out_bytes):
    resid = 2 * (in_dim * hidden + hidden * hidden + hidden * bneck)  # bf16, 1-buf
    resid += 4 * (hidden + hidden + bneck)                            # f32 biases
    x_t = 2 * (tm * in_dim * 2)          # double-buffered bf16 x tile
    wl_t = 2 * (bneck * to * 2)          # double-buffered bf16 w_last tile
    o_t = 2 * (tm * to * out_bytes)      # double-buffered output tile
    h_all = N * bneck * 2                # persistent bf16 scratch
    return resid + x_t + wl_t + o_t + h_all


def dino_head_forward(x, kparams, *, tm=None, to=None, row_groups=None,
                      out_dtype=jnp.bfloat16):
    N, in_dim = x.shape
    hidden = kparams["w1_t"].shape[1]
    bottleneck = kparams["w3_t"].shape[1]
    out_dim = kparams["w_last_t"].shape[1]

    if tm is None:
        tm = min(N, 256)
    if to is None:
        # Lane-dense, fits v7x's 64 MiB budget with bf16 output; raise on
        # v6e/v5e (128 MiB VMEM) if desired.
        to = min(out_dim, 4096)
    assert N % tm == 0, "row tile must divide batch"
    assert tm % 16 == 0, "row tile must be a multiple of 16 (bf16 h_all stores)"
    assert out_dim % to == 0, "column tile must divide out_dim"

    n_row_tiles = N // tm
    if row_groups is None:
        # 2 groups feeds both v7x TensorCores; costs one extra w_last stream
        # on single-TC chips (set row_groups=1 there to squeeze that out).
        row_groups = 2 if (n_row_tiles >= 2 and n_row_tiles % 2 == 0) else 1
    assert n_row_tiles % row_groups == 0
    rows_per_group = n_row_tiles // row_groups

    out_bytes = jnp.dtype(out_dtype).itemsize
    plan = _vmem_plan_bytes(N, in_dim, hidden, bottleneck, to, tm, out_bytes)
    vmem_limit = min(112 << 20, max(32 << 20, int(plan * 1.4) + (4 << 20)))

    grid = (row_groups, out_dim // to, rows_per_group)

    def x_map(g, j, r):
        # Row block of this grid step for j == 0 (MLP pass); for j > 0 the
        # block index is held constant so x is not re-DMA'd (it is unused).
        return (g * rows_per_group + jnp.where(j == 0, r, 0), 0)

    resident = dict(pipeline_mode=pl.Buffered(1))   # constant index -> 1 buffer

    in_specs = [
        pl.BlockSpec((tm, in_dim), x_map),                                   # x
        pl.BlockSpec((in_dim, hidden), lambda g, j, r: (0, 0), **resident),  # w1
        pl.BlockSpec((1, hidden), lambda g, j, r: (0, 0), **resident),       # b1
        pl.BlockSpec((hidden, hidden), lambda g, j, r: (0, 0), **resident),  # w2
        pl.BlockSpec((1, hidden), lambda g, j, r: (0, 0), **resident),       # b2
        pl.BlockSpec((hidden, bottleneck), lambda g, j, r: (0, 0), **resident),  # w3
        pl.BlockSpec((1, bottleneck), lambda g, j, r: (0, 0), **resident),   # b3
        pl.BlockSpec((bottleneck, to), lambda g, j, r: (0, j)),              # w_last
    ]
    out_specs = pl.BlockSpec((tm, to),
                             lambda g, j, r: (g * rows_per_group + r, j))

    return pl.pallas_call(
        dino_head_kernel,
        out_shape=jax.ShapeDtypeStruct((N, out_dim), out_dtype),
        grid_spec=pltpu.PrefetchScalarGridSpec(
            num_scalar_prefetch=0,
            grid=grid,
            in_specs=in_specs,
            out_specs=out_specs,
            scratch_shapes=[pltpu.VMEM((N, bottleneck), jnp.bfloat16)],
        ),
        compiler_params=pltpu.CompilerParams(
            # Column axis MUST stay "arbitrary" (h_all is filled at j == 0).
            dimension_semantics=("parallel", "arbitrary", "arbitrary"),
            vmem_limit_bytes=vmem_limit,
        ),
    )(x.astype(jnp.bfloat16), kparams["w1_t"], kparams["b1"], kparams["w2_t"],
      kparams["b2"], kparams["w3_t"], kparams["b3"], kparams["w_last_t"])


def init_params(key, in_dim, out_dim, hidden_dim, bottleneck_dim):
    """Deterministic synthetic init mirroring the PyTorch module's shapes.

    Linear weights: trunc_normal(std=0.02), biases zero (as in _init_weights).
    weight_norm v: small uniform; g filled with 1 (norm_last_layer=True).
    Weights are stored transposed: (in_features, out_features), f32 masters.
    """
    ks = jax.random.split(key, 4)

    def tn(k, shape):
        return 0.02 * jax.random.truncated_normal(k, -2.0, 2.0, shape, jnp.float32)

    return {
        "w1_t": tn(ks[0], (in_dim, hidden_dim)),
        "b1": jnp.zeros((1, hidden_dim), jnp.float32),
        "w2_t": tn(ks[1], (hidden_dim, hidden_dim)),
        "b2": jnp.zeros((1, hidden_dim), jnp.float32),
        "w3_t": tn(ks[2], (hidden_dim, bottleneck_dim)),
        "b3": jnp.zeros((1, bottleneck_dim), jnp.float32),
        "v_t": jax.random.uniform(ks[3], (bottleneck_dim, out_dim), jnp.float32,
                                  minval=-1.0 / math.sqrt(bottleneck_dim),
                                  maxval=1.0 / math.sqrt(bottleneck_dim)),
        "g": jnp.ones((1, out_dim), jnp.float32),   # weight_g.data.fill_(1)
    }


def reference_forward(x, p):
    # Pure-f32 reference with the exact PyTorch semantics.
    h = x @ p["w1_t"] + p["b1"]
    h = 0.5 * h * (1.0 + lax.erf(h / math.sqrt(2.0)))
    h = h @ p["w2_t"] + p["b2"]
    h = 0.5 * h * (1.0 + lax.erf(h / math.sqrt(2.0)))
    h = h @ p["w3_t"] + p["b3"]
    h = h / jnp.maximum(jnp.linalg.norm(h, axis=-1, keepdims=True), 1e-12)
    w = p["v_t"] * (p["g"] / jnp.linalg.norm(p["v_t"], axis=0, keepdims=True))
    return h @ w


if __name__ == "__main__":
    # Small shapes consistent with the module (scaled-down hidden/bottleneck/
    # out), chosen so the full 3-D grid (2 row groups x 2 col tiles x 2 row
    # tiles per group) is exercised.
    N, IN_DIM, HIDDEN, BOTTLENECK, OUT_DIM = 64, 96, 256, 128, 512
    TM, TO = 16, 256

    key = jax.random.PRNGKey(0)
    kx, kp = jax.random.split(key)
    x = jax.random.normal(kx, (N, IN_DIM), jnp.float32)
    raw = init_params(kp, IN_DIM, OUT_DIM, HIDDEN, BOTTLENECK)
    kparams = prepare_params(raw)

    out = dino_head_forward(x, kparams, tm=TM, to=TO, row_groups=2)
    out = jax.block_until_ready(out)

    ref = reference_forward(x, raw)
    assert out.shape == (N, OUT_DIM)
    assert out.dtype == jnp.bfloat16
    # bf16 weights/activations/output (f32 accumulation) vs pure-f32 reference
    # -> relaxed tolerance.  Downstream DINO loss math should upcast to f32.
    assert jnp.allclose(out.astype(jnp.float32), ref, atol=3e-2, rtol=3e-2), \
        "mismatch vs reference"

    print("KERNEL_OK")
</pallas_src>

<mosaic_0001>
module attributes {stable_mosaic.version = 11 : i64} {
  func.func @dino_head_kernel(%arg0: i32, %arg1: i32, %arg2: i32, %arg3: memref<16x96xbf16, #tpu.memory_space<vmem>>, %arg4: memref<96x256xbf16, #tpu.memory_space<vmem>>, %arg5: memref<1x256xf32, #tpu.memory_space<vmem>>, %arg6: memref<256x256xbf16, #tpu.memory_space<vmem>>, %arg7: memref<1x256xf32, #tpu.memory_space<vmem>>, %arg8: memref<256x128xbf16, #tpu.memory_space<vmem>>, %arg9: memref<1x128xf32, #tpu.memory_space<vmem>>, %arg10: memref<128x256xbf16, #tpu.memory_space<vmem>>, %arg11: memref<16x256xbf16, #tpu.memory_space<vmem>>, %arg12: memref<64x128xbf16, #tpu.memory_space<vmem>>) attributes {dimension_semantics = [#tpu.dimension_semantics<parallel>, #tpu.dimension_semantics<arbitrary>, #tpu.dimension_semantics<arbitrary>], iteration_bounds = array<i64: 2, 2, 2>, scalar_prefetch = 0 : i64, scratch_operands = 1 : i64, tpu.core_type = #tpu.core_type<tc>, window_params = [{transform_indices = @transform_0, window_bounds = array<i64: 16, 96>}, {pipeline_mode = #tpu.pipeline_mode<synchronous>, transform_indices = @transform_1, window_bounds = array<i64: 96, 256>}, {pipeline_mode = #tpu.pipeline_mode<synchronous>, transform_indices = @transform_2, window_bounds = array<i64: 1, 256>}, {pipeline_mode = #tpu.pipeline_mode<synchronous>, transform_indices = @transform_3, window_bounds = array<i64: 256, 256>}, {pipeline_mode = #tpu.pipeline_mode<synchronous>, transform_indices = @transform_4, window_bounds = array<i64: 1, 256>}, {pipeline_mode = #tpu.pipeline_mode<synchronous>, transform_indices = @transform_5, window_bounds = array<i64: 256, 128>}, {pipeline_mode = #tpu.pipeline_mode<synchronous>, transform_indices = @transform_6, window_bounds = array<i64: 1, 128>}, {transform_indices = @transform_7, window_bounds = array<i64: 128, 256>}, {transform_indices = @transform_8, window_bounds = array<i64: 16, 256>}]} {
    %c2_i32 = arith.constant 2 : i32
    %0 = arith.muli %arg0, %c2_i32 : i32
    %1 = arith.addi %0, %arg2 : i32
    %c16_i32 = arith.constant 16 : i32
    %2 = arith.muli %1, %c16_i32 : i32
    %3 = tpu.assume_multiple %2, 16 : i32
    %c0_i32 = arith.constant 0 : i32
    %4 = arith.cmpi eq, %arg1, %c0_i32 : i32
    %5 = arith.extui %4 : i1 to i32
    %c0_i32_0 = arith.constant 0 : i32
    %6 = arith.cmpi ne, %5, %c0_i32_0 : i32
    scf.if %6 {
      %c0_5 = arith.constant 0 : index
      %c0_6 = arith.constant 0 : index
      %13 = vector.load %arg3[%c0_5, %c0_6] : memref<16x96xbf16, #tpu.memory_space<vmem>>, vector<16x96xbf16>
      %c0_7 = arith.constant 0 : index
      %c0_8 = arith.constant 0 : index
      %14 = vector.load %arg4[%c0_7, %c0_8] : memref<96x256xbf16, #tpu.memory_space<vmem>>, vector<96x256xbf16>
      %cst_9 = arith.constant dense<0.000000e+00> : vector<16x256xf32>
      %15 = tpu.matmul %13, %14, %cst_9 {dimension_numbers = #tpu.dot_dimension_numbers<[1], [0], [0], [1], [0, 0, 1, 1], [], []>} : vector<16x96xbf16>, vector<96x256xbf16>, vector<16x256xf32> -> vector<16x256xf32>
      %c0_10 = arith.constant 0 : index
      %c0_11 = arith.constant 0 : index
      %16 = vector.load %arg5[%c0_10, %c0_11] : memref<1x256xf32, #tpu.memory_space<vmem>>, vector<1x256xf32>
      %17 = vector.broadcast %16 : vector<1x256xf32> to vector<16x256xf32>
      %18 = arith.addf %15, %17 : vector<16x256xf32>
      %cst_12 = arith.constant 5.000000e-01 : f32
      %19 = vector.broadcast %cst_12 : f32 to vector<16x256xf32>
      %20 = arith.mulf %19, %18 : vector<16x256xf32>
      %cst_13 = arith.constant 0.707106769 : f32
      %21 = vector.broadcast %cst_13 : f32 to vector<16x256xf32>
      %22 = arith.mulf %18, %21 : vector<16x256xf32>
      %23 = math.erf %22 : vector<16x256xf32>
      %cst_14 = arith.constant 1.000000e+00 : f32
      %24 = vector.broadcast %cst_14 : f32 to vector<16x256xf32>
      %25 = arith.addf %24, %23 : vector<16x256xf32>
      %26 = arith.mulf %20, %25 : vector<16x256xf32>
      %27 = arith.truncf %26 : vector<16x256xf32> to vector<16x256xbf16>
      %c0_15 = arith.constant 0 : index
      %c0_16 = arith.constant 0 : index
      %28 = vector.load %arg6[%c0_15, %c0_16] : memref<256x256xbf16, #tpu.memory_space<vmem>>, vector<256x256xbf16>
      %cst_17 = arith.constant dense<0.000000e+00> : vector<16x256xf32>
      %29 = tpu.matmul %27, %28, %cst_17 {dimension_numbers = #tpu.dot_dimension_numbers<[1], [0], [0], [1], [0, 0, 1, 1], [], []>} : vector<16x256xbf16>, vector<256x256xbf16>, vector<16x256xf32> -> vector<16x256xf32>
      %c0_18 = arith.constant 0 : index
      %c0_19 = arith.constant 0 : index
      %30 = vector.load %arg7[%c0_18, %c0_19] : memref<1x256xf32, #tpu.memory_space<vmem>>, vector<1x256xf32>
      %31 = vector.broadcast %30 : vector<1x256xf32> to vector<16x256xf32>
      %32 = arith.addf %29, %31 : vector<16x256xf32>
      %cst_20 = arith.constant 5.000000e-01 : f32
      %33 = vector.broadcast %cst_20 : f32 to vector<16x256xf32>
      %34 = arith.mulf %33, %32 : vector<16x256xf32>
      %cst_21 = arith.constant 0.707106769 : f32
      %35 = vector.broadcast %cst_21 : f32 to vector<16x256xf32>
      %36 = arith.mulf %32, %35 : vector<16x256xf32>
      %37 = math.erf %36 : vector<16x256xf32>
      %cst_22 = arith.constant 1.000000e+00 : f32
      %38 = vector.broadcast %cst_22 : f32 to vector<16x256xf32>
      %39 = arith.addf %38, %37 : vector<16x256xf32>
      %40 = arith.mulf %34, %39 : vector<16x256xf32>
      %41 = arith.truncf %40 : vector<16x256xf32> to vector<16x256xbf16>
      %c0_23 = arith.constant 0 : index
      %c0_24 = arith.constant 0 : index
      %42 = vector.load %arg8[%c0_23, %c0_24] : memref<256x128xbf16, #tpu.memory_space<vmem>>, vector<256x128xbf16>
      %cst_25 = arith.constant dense<0.000000e+00> : vector<16x128xf32>
      %43 = tpu.matmul %41, %42, %cst_25 {dimension_numbers = #tpu.dot_dimension_numbers<[1], [0], [0], [1], [0, 0, 1, 1], [], []>} : vector<16x256xbf16>, vector<256x128xbf16>, vector<16x128xf32> -> vector<16x128xf32>
      %c0_26 = arith.constant 0 : index
      %c0_27 = arith.constant 0 : index
      %44 = vector.load %arg9[%c0_26, %c0_27] : memref<1x128xf32, #tpu.memory_space<vmem>>, vector<1x128xf32>
      %45 = vector.broadcast %44 : vector<1x128xf32> to vector<16x128xf32>
      %46 = arith.addf %43, %45 : vector<16x128xf32>
      %47 = arith.mulf %46, %46 : vector<16x128xf32>
      %cst_28 = arith.constant dense<0.000000e+00> : vector<16xf32>
      %48 = vector.multi_reduction <add>, %47, %cst_28 [1] : vector<16x128xf32> to vector<16xf32>
      %49 = vector.shape_cast %48 : vector<16xf32> to vector<16x1xf32>
      %cst_29 = arith.constant 1.000000e-24 : f32
      %50 = vector.broadcast %cst_29 : f32 to vector<16x1xf32>
      %51 = arith.maximumf %49, %50 : vector<16x1xf32>
      %52 = math.rsqrt %51 : vector<16x1xf32>
      %53 = vector.broadcast %52 : vector<16x1xf32> to vector<16x128xf32>
      %54 = arith.mulf %46, %53 : vector<16x128xf32>
      %55 = arith.truncf %54 : vector<16x128xf32> to vector<16x128xbf16>
      %56 = arith.index_cast %3 : i32 to index
      %c0_30 = arith.constant 0 : index
      %57 = vector.load %arg12[%56, %c0_30] : memref<64x128xbf16, #tpu.memory_space<vmem>>, vector<16x128xbf16>
      tpu.vector_store %arg12[%56, %c0_30], %55 {strides = array<i32>} : memref<64x128xbf16, #tpu.memory_space<vmem>>, vector<16x128xbf16>,
    } else {
    }
    %7 = arith.index_cast %3 : i32 to index
    %c0 = arith.constant 0 : index
    %8 = vector.load %arg12[%7, %c0] : memref<64x128xbf16, #tpu.memory_space<vmem>>, vector<16x128xbf16>
    %c0_1 = arith.constant 0 : index
    %c0_2 = arith.constant 0 : index
    %9 = vector.load %arg10[%c0_1, %c0_2] : memref<128x256xbf16, #tpu.memory_space<vmem>>, vector<128x256xbf16>
    %cst = arith.constant dense<0.000000e+00> : vector<16x256xf32>
    %10 = tpu.matmul %8, %9, %cst {dimension_numbers = #tpu.dot_dimension_numbers<[1], [0], [0], [1], [0, 0, 1, 1], [], []>} : vector<16x128xbf16>, vector<128x256xbf16>, vector<16x256xf32> -> vector<16x256xf32>
    %11 = arith.truncf %10 : vector<16x256xf32> to vector<16x256xbf16>
    %c0_3 = arith.constant 0 : index
    %c0_4 = arith.constant 0 : index
    %12 = vector.load %arg11[%c0_3, %c0_4] : memref<16x256xbf16, #tpu.memory_space<vmem>>, vector<16x256xbf16>
    tpu.vector_store %arg11[%c0_3, %c0_4], %11 {strides = array<i32>} : memref<16x256xbf16, #tpu.memory_space<vmem>>, vector<16x256xbf16>,
    return
  }
  func.func @transform_0(%arg0: i32, %arg1: i32, %arg2: i32) -> (i32, i32) {
    %c2_i32 = arith.constant 2 : i32
    %0 = arith.muli %arg0, %c2_i32 : i32
    %c0_i32 = arith.constant 0 : i32
    %1 = arith.cmpi eq, %arg1, %c0_i32 : i32
    %c0_i32_0 = arith.constant 0 : i32
    %2 = arith.select %1, %arg2, %c0_i32_0 : i32
    %3 = arith.addi %0, %2 : i32
    %c0_i32_1 = arith.constant 0 : i32
    %c0_i32_2 = arith.constant 0 : i32
    return %3, %c0_i32_1 : i32, i32
  }
  func.func @transform_1(%arg0: i32, %arg1: i32, %arg2: i32) -> (i32, i32) {
    %c0_i32 = arith.constant 0 : i32
    %c0_i32_0 = arith.constant 0 : i32
    %c0_i32_1 = arith.constant 0 : i32
    return %c0_i32, %c0_i32_0 : i32, i32
  }
  func.func @transform_2(%arg0: i32, %arg1: i32, %arg2: i32) -> (i32, i32) {
    %c0_i32 = arith.constant 0 : i32
    %c0_i32_0 = arith.constant 0 : i32
    %c0_i32_1 = arith.constant 0 : i32
    return %c0_i32, %c0_i32_0 : i32, i32
  }
  func.func @transform_3(%arg0: i32, %arg1: i32, %arg2: i32) -> (i32, i32) {
    %c0_i32 = arith.constant 0 : i32
    %c0_i32_0 = arith.constant 0 : i32
    %c0_i32_1 = arith.constant 0 : i32
    return %c0_i32, %c0_i32_0 : i32, i32
  }
  func.func @transform_4(%arg0: i32, %arg1: i32, %arg2: i32) -> (i32, i32) {
    %c0_i32 = arith.constant 0 : i32
    %c0_i32_0 = arith.constant 0 : i32
    %c0_i32_1 = arith.constant 0 : i32
    return %c0_i32, %c0_i32_0 : i32, i32
  }
  func.func @transform_5(%arg0: i32, %arg1: i32, %arg2: i32) -> (i32, i32) {
    %c0_i32 = arith.constant 0 : i32
    %c0_i32_0 = arith.constant 0 : i32
    %c0_i32_1 = arith.constant 0 : i32
    return %c0_i32, %c0_i32_0 : i32, i32
  }
  func.func @transform_6(%arg0: i32, %arg1: i32, %arg2: i32) -> (i32, i32) {
    %c0_i32 = arith.constant 0 : i32
    %c0_i32_0 = arith.constant 0 : i32
    %c0_i32_1 = arith.constant 0 : i32
    return %c0_i32, %c0_i32_0 : i32, i32
  }
  func.func @transform_7(%arg0: i32, %arg1: i32, %arg2: i32) -> (i32, i32) {
    %c0_i32 = arith.constant 0 : i32
    %c0_i32_0 = arith.constant 0 : i32
    return %c0_i32, %arg1 : i32, i32
  }
  func.func @transform_8(%arg0: i32, %arg1: i32, %arg2: i32) -> (i32, i32) {
    %c2_i32 = arith.constant 2 : i32
    %0 = arith.muli %arg0, %c2_i32 : i32
    %1 = arith.addi %0, %arg2 : i32
    %c0_i32 = arith.constant 0 : i32
    return %1, %arg1 : i32, i32
  }
}

</mosaic_0001>

<llo_original>
// kernel: tpu_custom_call.1
$region0: #{tpu_custom_call.1}
  #allocation0 [shape = 'u32[]', space=smem, size = 0x4, offset = 0x4, fixed_abs, tag = 'smem constant byte address 0x4 - core index']
  #allocation1 [shape = 'u32[144,128]{1,0:T(1,128)}', space=vmem, size = 0x12000, scoped, tag = 'internal scratch']
  #allocation2 [shape = 'bf16[64,128]{1,0:T(16,128)(2,1)}', space=vmem, size = 0x4000, scoped, tag = 'scratch operand']
  %s0 = inlined_call_operand.hbm [shape: bf16[64,96], index: 0, kind: input, shape index: {}]
  %s1 = inlined_call_operand.hbm [shape: bf16[96,256], index: 1, kind: input, shape index: {}]
  %s2 = inlined_call_operand.vmem [shape: f32[1,256], index: 2, kind: input, shape index: {}]
  %s3 = inlined_call_operand.hbm [shape: bf16[256,256], index: 3, kind: input, shape index: {}]
  %s4 = inlined_call_operand.vmem [shape: f32[1,256], index: 4, kind: input, shape index: {}]
  %s5 = inlined_call_operand.hbm [shape: bf16[256,128], index: 5, kind: input, shape index: {}]
  %s6 = inlined_call_operand.vmem [shape: f32[1,128], index: 6, kind: input, shape index: {}]
  %s7 = inlined_call_operand.hbm [shape: bf16[128,512], index: 7, kind: input, shape index: {}]
  %s8 = inlined_call_operand.hbm [shape: bf16[64,512], index: 8, kind: output, shape index: {}]
  %s9 = sld [smem:[#allocation0]]
  $region89: #{tpu_custom_call.1} parent=0
    _
  %s11 = ssub.s32 1, %s9
  %s12 = scalar_select 0, %s11, %s9
  $region1: #{tpu_custom_call.1} parent=0
    #allocation3 [shape = 'u8[8192]{0}', space=vmem, size = 0x2000, scoped, tag = 'input window, operand 0']
    #allocation4 [shape = 's32[2]{0}', space=sflag, size = 0x8, scoped, tag = 'scoped memory for tpu_custom_call.1']
    #allocation5 [shape = 's32[2]{0}', space=sflag, size = 0x8, scoped, tag = 'scoped memory for tpu_custom_call.1']
    #allocation6 [shape = 'u8[49152]{0}', space=vmem, size = 0xc000, scoped, tag = 'input window, operand 1, single buffered']
    #allocation7 [shape = 's32[1]{0}', space=sflag, size = 0x4, scoped, tag = 'scoped memory for tpu_custom_call.1']
    #allocation8 [shape = 'u8[131072]{0}', space=vmem, size = 0x20000, scoped, tag = 'input window, operand 3, single buffered']
    #allocation9 [shape = 'u8[65536]{0}', space=vmem, size = 0x10000, scoped, tag = 'input window, operand 5, single buffered']
    #allocation10 [shape = 's32[1]{0}', space=sflag, size = 0x4, scoped, tag = 'scoped memory for tpu_custom_call.1']
    #allocation11 [shape = 'u8[131072]{0}', space=vmem, size = 0x20000, scoped, tag = 'input window, operand 7']
    #allocation12 [shape = 'u8[16384]{0}', space=vmem, size = 0x4000, scoped, tag = 'output window, operand 0']
    %13 = vsyncpa [#allocation4], 0
    %s14 = scalar_lea.sflag [#allocation4], 1
    %15 = vsyncpa %s14, 0
    %16 = vsyncpa [#allocation7], 0
    %17 = vsyncpa [#allocation10], 0
    %18 = vsyncpa [#allocation5], 0
    %s19 = scalar_lea.sflag [#allocation5], 1
    %20 = vsyncpa %s19, 0
    loop: start=0, step=1, limit=10
    $region2: #{tpu_custom_call.1} parent=1 // loop_pre_header
      _
    $region3: #{tpu_custom_call.1} parent=1 // loop_header
      %s22 = sphi 0, %s26
      %p23 = scmp.ge.s32.totalorder %s22, 10
      %s29 = sphi 0, %s48
      %s30 = sphi 0, %s44
      %s31 = sphi 0, %s40
      %s32 = sphi 0, %s29
      %s33 = sphi 0, %s30
      %s34 = sphi 0, %s31
      %s35 = sphi 0, %s32
      %s36 = sphi 0, %s33
      %s37 = sphi 0, %s34
      %s59 = sphi 0, %s61
      %s62 = sphi 0, %s59
      %s63 = sphi 0, %s62
      %s79 = sphi 0, %s63
      %s83 = sphi 0, %s83
      %s85 = sphi 0, %s83
      %s86 = sphi 0, %s85
      %s100 = sphi 0, %s86
      %s104 = sphi 0, %s104
      %s106 = sphi 0, %s104
      %s107 = sphi 0, %s106
      %s121 = sphi 0, %s107
      %s125 = sphi 0, %s125
      %s127 = sphi 0, %s125
      %s128 = sphi 0, %s127
      %s142 = sphi 0, %s128
      %s146 = sphi 0, %s146
      %s148 = sphi 0, %s146
      %s149 = sphi 0, %s148
      %s163 = sphi 0, %s149
      %s167 = sphi 0, %s167
      %s169 = sphi 0, %s167
      %s170 = sphi 0, %s169
      %s184 = sphi 0, %s170
      %s188 = sphi 0, %s188
      %s190 = sphi 0, %s188
      %s191 = sphi 0, %s190
      %s205 = sphi 0, %s191
      %s211 = sphi 0, %s213
      %s214 = sphi 0, %s211
      %s215 = sphi 0, %s214
      %s231 = sphi 0, %s215
      %s243 = sphi 0, %s245
      %s246 = sphi 0, %s243
      %s247 = sphi 0, %s246
      %s263 = sphi 0, %s247
    $region4: #{tpu_custom_call.1} parent=1 // loop_header_branch
      %25 = sbr.rel (%p23) target = $region8
    $region5: #{tpu_custom_call.1} parent=1 // loop_body
      %s27 = ssub.s32 %s22, 1
      %s28 = ssub.s32 %s22, 2
      %s38 = sadd.s32 1, %s31
      %p39 = scmp.ge.s32.totalorder %s38, 2
      %s40 = scalar_select %p39, 0, %s38
      %s41 = sadd.s32 1, %s30
      %s42 = scalar_select %p39, %s41, %s30
      %p43 = scmp.ge.s32.totalorder %s42, 2
      %s44 = scalar_select %p43, 0, %s42
      %s45 = sadd.s32 1, %s29
      %s46 = scalar_select %p43, %s45, %s29
      %p47 = scmp.ge.s32.totalorder %s46, 2
      %s48 = scalar_select %p47, 0, %s46
      %s49 = smul.u32 %s29, 2
      %p50 = scmp.eq.s32.totalorder %s30, 0
      %s51 = scalar_select %p50, %s31, 0
      %s52 = sadd.s32 %s49, %s51
      %s53 = smul.u32 %s48, 2
      %p54 = scmp.eq.s32.totalorder %s44, 0
      %s55 = scalar_select %p54, %s40, 0
      %s56 = sadd.s32 %s53, %s55
      %s57 = ssub.s32 %s52, %s56
      %p58 = scmp.eq.s32.totalorder %s57, 0
      %s60 = sadd.s32 %s59, 1
      %s61 = scalar_select %p58, %s59, %s60
      %p64 = pneg %p58
      %p65 = scmp.eq.s32.totalorder %s22, 7
      %p66 = por %p64, %p65
      %p67 = scmp.ne.s32.totalorder %s59, %s62
      %p68 = scmp.eq.s32.totalorder %s22, 0
      %p69 = por %p67, %p68
      %p70 = scmp.ne.s32.totalorder %s59, %s62
      %p71 = scmp.eq.s32.totalorder %s27, 7
      %p72 = por %p70, %p71
      %p73 = scmp.ne.s32.totalorder %s62, %s63
      %p74 = scmp.eq.s32.totalorder %s27, 0
      %p75 = por %p73, %p74
      %p76 = scmp.ne.s32.totalorder %s62, %s63
      %p77 = scmp.eq.s32.totalorder %s28, 7
      %p78 = por %p76, %p77
      %p80 = scmp.ne.s32.totalorder %s63, %s79
      %p81 = scmp.eq.s32.totalorder %s28, 0
      %p82 = por %p80, %p81
      %s84 = sadd.s32 %s83, 1
      %p87 = scmp.eq.s32.totalorder %s22, 7
      %p88 = scmp.ne.s32.totalorder %s83, %s85
      %p89 = scmp.eq.s32.totalorder %s22, 0
      %p90 = por %p88, %p89
      %p91 = scmp.ne.s32.totalorder %s83, %s85
      %p92 = scmp.eq.s32.totalorder %s27, 7
      %p93 = por %p91, %p92
      %p94 = scmp.ne.s32.totalorder %s85, %s86
      %p95 = scmp.eq.s32.totalorder %s27, 0
      %p96 = por %p94, %p95
      %p97 = scmp.ne.s32.totalorder %s85, %s86
      %p98 = scmp.eq.s32.totalorder %s28, 7
      %p99 = por %p97, %p98
      %p101 = scmp.ne.s32.totalorder %s86, %s100
      %p102 = scmp.eq.s32.totalorder %s28, 0
      %p103 = por %p101, %p102
      %s105 = sadd.s32 %s104, 1
      %p108 = scmp.eq.s32.totalorder %s22, 7
      %p109 = scmp.ne.s32.totalorder %s104, %s106
      %p110 = scmp.eq.s32.totalorder %s22, 0
      %p111 = por %p109, %p110
      %p112 = scmp.ne.s32.totalorder %s104, %s106
      %p113 = scmp.eq.s32.totalorder %s27, 7
      %p114 = por %p112, %p113
      %p115 = scmp.ne.s32.totalorder %s106, %s107
      %p116 = scmp.eq.s32.totalorder %s27, 0
      %p117 = por %p115, %p116
      %p118 = scmp.ne.s32.totalorder %s106, %s107
      %p119 = scmp.eq.s32.totalorder %s28, 7
      %p120 = por %p118, %p119
      %p122 = scmp.ne.s32.totalorder %s107, %s121
      %p123 = scmp.eq.s32.totalorder %s28, 0
      %p124 = por %p122, %p123
      %s126 = sadd.s32 %s125, 1
      %p129 = scmp.eq.s32.totalorder %s22, 7
      %p130 = scmp.ne.s32.totalorder %s125, %s127
      %p131 = scmp.eq.s32.totalorder %s22, 0
      %p132 = por %p130, %p131
      %p133 = scmp.ne.s32.totalorder %s125, %s127
      %p134 = scmp.eq.s32.totalorder %s27, 7
      %p135 = por %p133, %p134
      %p136 = scmp.ne.s32.totalorder %s127, %s128
      %p137 = scmp.eq.s32.totalorder %s27, 0
      %p138 = por %p136, %p137
      %p139 = scmp.ne.s32.totalorder %s127, %s128
      %p140 = scmp.eq.s32.totalorder %s28, 7
      %p141 = por %p139, %p140
      %p143 = scmp.ne.s32.totalorder %s128, %s142
      %p144 = scmp.eq.s32.totalorder %s28, 0
      %p145 = por %p143, %p144
      %s147 = sadd.s32 %s146, 1
      %p150 = scmp.eq.s32.totalorder %s22, 7
      %p151 = scmp.ne.s32.totalorder %s146, %s148
      %p152 = scmp.eq.s32.totalorder %s22, 0
      %p153 = por %p151, %p152
      %p154 = scmp.ne.s32.totalorder %s146, %s148
      %p155 = scmp.eq.s32.totalorder %s27, 7
      %p156 = por %p154, %p155
      %p157 = scmp.ne.s32.totalorder %s148, %s149
      %p158 = scmp.eq.s32.totalorder %s27, 0
      %p159 = por %p157, %p158
      %p160 = scmp.ne.s32.totalorder %s148, %s149
      %p161 = scmp.eq.s32.totalorder %s28, 7
      %p162 = por %p160, %p161
      %p164 = scmp.ne.s32.totalorder %s149, %s163
      %p165 = scmp.eq.s32.totalorder %s28, 0
      %p166 = por %p164, %p165
      %s168 = sadd.s32 %s167, 1
      %p171 = scmp.eq.s32.totalorder %s22, 7
      %p172 = scmp.ne.s32.totalorder %s167, %s169
      %p173 = scmp.eq.s32.totalorder %s22, 0
      %p174 = por %p172, %p173
      %p175 = scmp.ne.s32.totalorder %s167, %s169
      %p176 = scmp.eq.s32.totalorder %s27, 7
      %p177 = por %p175, %p176
      %p178 = scmp.ne.s32.totalorder %s169, %s170
      %p179 = scmp.eq.s32.totalorder %s27, 0
      %p180 = por %p178, %p179
      %p181 = scmp.ne.s32.totalorder %s169, %s170
      %p182 = scmp.eq.s32.totalorder %s28, 7
      %p183 = por %p181, %p182
      %p185 = scmp.ne.s32.totalorder %s170, %s184
      %p186 = scmp.eq.s32.totalorder %s28, 0
      %p187 = por %p185, %p186
      %s189 = sadd.s32 %s188, 1
      %p192 = scmp.eq.s32.totalorder %s22, 7
      %p193 = scmp.ne.s32.totalorder %s188, %s190
      %p194 = scmp.eq.s32.totalorder %s22, 0
      %p195 = por %p193, %p194
      %p196 = scmp.ne.s32.totalorder %s188, %s190
      %p197 = scmp.eq.s32.totalorder %s27, 7
      %p198 = por %p196, %p197
      %p199 = scmp.ne.s32.totalorder %s190, %s191
      %p200 = scmp.eq.s32.totalorder %s27, 0
      %p201 = por %p199, %p200
      %p202 = scmp.ne.s32.totalorder %s190, %s191
      %p203 = scmp.eq.s32.totalorder %s28, 7
      %p204 = por %p202, %p203
      %p206 = scmp.ne.s32.totalorder %s191, %s205
      %p207 = scmp.eq.s32.totalorder %s28, 0
      %p208 = por %p206, %p207
      %s209 = ssub.s32 %s30, %s44
      %p210 = scmp.eq.s32.totalorder %s209, 0
      %s212 = sadd.s32 %s211, 1
      %s213 = scalar_select %p210, %s211, %s212
      %p216 = pneg %p210
      %p217 = scmp.eq.s32.totalorder %s22, 7
      %p218 = por %p216, %p217
      %p219 = scmp.ne.s32.totalorder %s211, %s214
      %p220 = scmp.eq.s32.totalorder %s22, 0
      %p221 = por %p219, %p220
      %p222 = scmp.ne.s32.totalorder %s211, %s214
      %p223 = scmp.eq.s32.totalorder %s27, 7
      %p224 = por %p222, %p223
      %p225 = scmp.ne.s32.totalorder %s214, %s215
      %p226 = scmp.eq.s32.totalorder %s27, 0
      %p227 = por %p225, %p226
      %p228 = scmp.ne.s32.totalorder %s214, %s215
      %p229 = scmp.eq.s32.totalorder %s28, 7
      %p230 = por %p228, %p229
      %p232 = scmp.ne.s32.totalorder %s215, %s231
      %p233 = scmp.eq.s32.totalorder %s28, 0
      %p234 = por %p232, %p233
      %s235 = smul.u32 %s29, 2
      %s236 = sadd.s32 %s235, %s31
      %s237 = smul.u32 %s48, 2
      %s238 = sadd.s32 %s237, %s40
      %s239 = ssub.s32 %s236, %s238
      %s240 = ssub.s32 %s30, %s44
      %s241 = sor.u32 %s239, %s240
      %p242 = scmp.eq.s32.totalorder %s241, 0
      %s244 = sadd.s32 %s243, 1
      %s245 = scalar_select %p242, %s243, %s244
      %p248 = pneg %p242
      %p249 = scmp.eq.s32.totalorder %s22, 7
      %p250 = por %p248, %p249
      %p251 = scmp.ne.s32.totalorder %s243, %s246
      %p252 = scmp.eq.s32.totalorder %s22, 0
      %p253 = por %p251, %p252
      %p254 = scmp.ne.s32.totalorder %s243, %s246
      %p255 = scmp.eq.s32.totalorder %s27, 7
      %p256 = por %p254, %p255
      %p257 = scmp.ne.s32.totalorder %s246, %s247
      %p258 = scmp.eq.s32.totalorder %s27, 0
      %p259 = por %p257, %p258
      %p260 = scmp.ne.s32.totalorder %s246, %s247
      %p261 = scmp.eq.s32.totalorder %s28, 7
      %p262 = por %p260, %p261
      %p264 = scmp.ne.s32.totalorder %s247, %s263
      %p265 = scmp.eq.s32.totalorder %s28, 0
      %p266 = por %p264, %p265
      %p267 = scmp.le.s32.totalorder 1, %s22
      %p268 = scmp.lt.s32.totalorder %s22, 9
      %p269 = pnand %p267, %p268
      %p270 = pneg %p269
      // Predicated region
      $region9: #{tpu_custom_call.1} parent=5 // pred_check
        _
      $region10: #{tpu_custom_call.1} parent=5 // pred_check_branch
        %272 = sbr.rel (%p269) target = $region12
      $region11: #{tpu_custom_call.1} parent=5 // pred_region
        %s273 = ssub.s32 %s22, 1
        // Predicated region
        $region13: #{tpu_custom_call.1} parent=11 // pred_check
          %p274 = pneg %p96
        $region14: #{tpu_custom_call.1} parent=11 // pred_check_branch
          %276 = sbr.rel (%p274) target = $region16
        $region15: #{tpu_custom_call.1} parent=11 // pred_region
          %s278 = ssub.s32 1536, 1536
          %279 = vsyncadd [#allocation7], %s278
          %s280 = sshll.u32 [#allocation6], 4
          %s281 = int_to_ptr.vmem [resolvable:$true] %s280
          %286 = dma.hbm_to_vmem [thread:$0]  %s1, 1536, %s281, [#allocation7], 128, 128, 8
        $region16: #{tpu_custom_call.1} parent=11 // pred_fallthru
          _
        // Predicated region
        $region17: #{tpu_custom_call.1} parent=11 // pred_check
          %p287 = pneg %p117
        $region18: #{tpu_custom_call.1} parent=11 // pred_check_branch
          %289 = sbr.rel (%p287) target = $region20
        $region19: #{tpu_custom_call.1} parent=11 // pred_region
          _
        $region20: #{tpu_custom_call.1} parent=11 // pred_fallthru
          _
        // Predicated region
        $region21: #{tpu_custom_call.1} parent=11 // pred_check
          %p290 = pneg %p138
        $region22: #{tpu_custom_call.1} parent=11 // pred_check_branch
          %292 = sbr.rel (%p290) target = $region24
        $region23: #{tpu_custom_call.1} parent=11 // pred_region
          %s294 = ssub.s32 4096, 4096
          %295 = vsyncadd [#allocation7], %s294
          %s296 = sshll.u32 [#allocation8], 4
          %s297 = int_to_ptr.vmem [resolvable:$true] %s296
          %302 = dma.hbm_to_vmem [thread:$0]  %s3, 4096, %s297, [#allocation7], 128, 128, 8
        $region24: #{tpu_custom_call.1} parent=11 // pred_fallthru
          _
        // Predicated region
        $region25: #{tpu_custom_call.1} parent=11 // pred_check
          %p303 = pneg %p159
        $region26: #{tpu_custom_call.1} parent=11 // pred_check_branch
          %305 = sbr.rel (%p303) target = $region28
        $region27: #{tpu_custom_call.1} parent=11 // pred_region
          _
        $region28: #{tpu_custom_call.1} parent=11 // pred_fallthru
          _
        // Predicated region
        $region29: #{tpu_custom_call.1} parent=11 // pred_check
          %p306 = pneg %p180
        $region30: #{tpu_custom_call.1} parent=11 // pred_check_branch
          %308 = sbr.rel (%p306) target = $region32
        $region31: #{tpu_custom_call.1} parent=11 // pred_region
          %s310 = ssub.s32 2048, 2048
          %311 = vsyncadd [#allocation10], %s310
          %s312 = sshll.u32 [#allocation9], 4
          %s313 = int_to_ptr.vmem [resolvable:$true] %s312
          %318 = dma.hbm_to_vmem [thread:$0]  %s5, 2048, %s313, [#allocation10], 64, 64, 4
        $region32: #{tpu_custom_call.1} parent=11 // pred_fallthru
          _
        // Predicated region
        $region33: #{tpu_custom_call.1} parent=11 // pred_check
          %p319 = pneg %p201
        $region34: #{tpu_custom_call.1} parent=11 // pred_check_branch
          %321 = sbr.rel (%p319) target = $region36
        $region35: #{tpu_custom_call.1} parent=11 // pred_region
          _
        $region36: #{tpu_custom_call.1} parent=11 // pred_fallthru
          _
      $region12: #{tpu_custom_call.1} parent=5 // pred_fallthru
        _
      %p322 = scmp.lt.s32.totalorder %s22, 8
      // Predicated region
      $region37: #{tpu_custom_call.1} parent=5 // pred_check
        %p323 = pneg %p322
      $region38: #{tpu_custom_call.1} parent=5 // pred_check_branch
        %325 = sbr.rel (%p323) target = $region40
      $region39: #{tpu_custom_call.1} parent=5 // pred_region
        // Predicated region
        $region41: #{tpu_custom_call.1} parent=39 // pred_check
          %p326 = pneg %p69
        $region42: #{tpu_custom_call.1} parent=39 // pred_check_branch
          %328 = sbr.rel (%p326) target = $region44
        $region43: #{tpu_custom_call.1} parent=39 // pred_region
          %s329 = sand.u32 %s22, 1
          %s330 = scalar_lea.sflag [#allocation4], %s329
          %s331 = sand.u32 %s59, 1
          %s332 = smul.addr %s331, 8
          %s333 = scalar_lea.vmem [#allocation3], %s332
          %s334 = smul.u32 %s29, 2
          %p335 = scmp.eq.s32.totalorder %s30, 0
          %s336 = scalar_select %p335, %s31, 0
          %s337 = sadd.s32 %s334, %s336
          %s338 = smul.u32 2, %s337
          %s340 = ssub.s32 128, 128
          %341 = vsyncadd %s330, %s340
          %s342 = smul.addr %s338, 64
          %s343 = scalar_lea.hbm %s0, %s342
          %s344 = sshll.u32 %s333, 4
          %s345 = int_to_ptr.vmem [resolvable:$true] %s344
          %350 = dma.hbm_to_vmem [thread:$0]  %s343, 128, %s345, %s330, 64, 64, 4
        $region44: #{tpu_custom_call.1} parent=39 // pred_fallthru
          _
        // Predicated region
        $region45: #{tpu_custom_call.1} parent=39 // pred_check
          %p351 = pneg %p221
        $region46: #{tpu_custom_call.1} parent=39 // pred_check_branch
          %353 = sbr.rel (%p351) target = $region48
        $region47: #{tpu_custom_call.1} parent=39 // pred_region
          %s354 = sand.u32 %s22, 1
          %s355 = scalar_lea.sflag [#allocation4], %s354
          %s356 = sand.u32 %s211, 1
          %s357 = smul.addr %s356, 128
          %s358 = scalar_lea.vmem [#allocation11], %s357
          %s359 = smul.u32 2, %s30
          %s361 = ssub.s32 2048, 2048
          %362 = vsyncadd %s355, %s361
          %s363 = smul.addr %s359, 64
          %s364 = scalar_lea.hbm %s7, %s363
          %s365 = sshll.u32 %s358, 4
          %s366 = int_to_ptr.vmem [resolvable:$true] %s365
          %371 = dma.hbm_to_vmem [thread:$0]  %s364, 2048, %s366, %s355, 256, 128, 8
        $region48: #{tpu_custom_call.1} parent=39 // pred_fallthru
          _
      $region40: #{tpu_custom_call.1} parent=5 // pred_fallthru
        _
      %p372 = scmp.le.s32.totalorder 1, %s22
      %p373 = scmp.lt.s32.totalorder %s22, 9
      %p374 = pnand %p372, %p373
      %p375 = pneg %p374
      // Predicated region
      $region49: #{tpu_custom_call.1} parent=5 // pred_check
        _
      $region50: #{tpu_custom_call.1} parent=5 // pred_check_branch
        %377 = sbr.rel (%p374) target = $region52
      $region51: #{tpu_custom_call.1} parent=5 // pred_region
        %s378 = ssub.s32 %s22, 1
        %s379 = sand.u32 %s27, 1
        %s380 = scalar_lea.sflag [#allocation4], %s379
        %s381 = sand.u32 %s62, 1
        %s382 = smul.addr %s381, 8
        %s383 = scalar_lea.vmem [#allocation3], %s382
        // Predicated region
        $region53: #{tpu_custom_call.1} parent=51 // pred_check
          %p384 = pneg %p75
        $region54: #{tpu_custom_call.1} parent=51 // pred_check_branch
          %386 = sbr.rel (%p384) target = $region56
        $region55: #{tpu_custom_call.1} parent=51 // pred_region
          %387 = dma.done %s380, 128
        $region56: #{tpu_custom_call.1} parent=51 // pred_fallthru
          _
        // Predicated region
        $region57: #{tpu_custom_call.1} parent=51 // pred_check
          %p388 = pneg %p96
        $region58: #{tpu_custom_call.1} parent=51 // pred_check_branch
          %390 = sbr.rel (%p388) target = $region60
        $region59: #{tpu_custom_call.1} parent=51 // pred_region
          %391 = dma.done [#allocation7], 1536
        $region60: #{tpu_custom_call.1} parent=51 // pred_fallthru
          _
        // Predicated region
        $region61: #{tpu_custom_call.1} parent=51 // pred_check
          %p392 = pneg %p138
        $region62: #{tpu_custom_call.1} parent=51 // pred_check_branch
          %394 = sbr.rel (%p392) target = $region64
        $region63: #{tpu_custom_call.1} parent=51 // pred_region
          %395 = dma.done [#allocation7], 4096
        $region64: #{tpu_custom_call.1} parent=51 // pred_fallthru
          _
        // Predicated region
        $region65: #{tpu_custom_call.1} parent=51 // pred_check
          %p396 = pneg %p180
        $region66: #{tpu_custom_call.1} parent=51 // pred_check_branch
          %398 = sbr.rel (%p396) target = $region68
        $region67: #{tpu_custom_call.1} parent=51 // pred_region
          %399 = dma.done [#allocation10], 2048
        $region68: #{tpu_custom_call.1} parent=51 // pred_fallthru
          _
        %s400 = sand.u32 %s27, 1
        %s401 = scalar_lea.sflag [#allocation4], %s400
        %s402 = sand.u32 %s214, 1
        %s403 = smul.addr %s402, 128
        %s404 = scalar_lea.vmem [#allocation11], %s403
        // Predicated region
        $region69: #{tpu_custom_call.1} parent=51 // pred_check
          %p405 = pneg %p227
        $region70: #{tpu_custom_call.1} parent=51 // pred_check_branch
          %407 = sbr.rel (%p405) target = $region72
        $region71: #{tpu_custom_call.1} parent=51 // pred_region
          %408 = dma.done %s401, 2048
        $region72: #{tpu_custom_call.1} parent=51 // pred_fallthru
          _
        %s409 = sand.u32 %s27, 1
        %s410 = scalar_lea.sflag [#allocation4], %s409
        %s411 = sand.u32 %s62, 1
        %s412 = smul.addr %s411, 8
        %s413 = scalar_lea.vmem [#allocation3], %s412
        %p414 = pneg %p75
        %p415 = pneg %p72
        %p416 = pneg %p96
        %p417 = pneg %p93
        %p418 = pneg %p117
        %p419 = pneg %p114
        %p420 = pneg %p138
        %p421 = pneg %p135
        %p422 = pneg %p159
        %p423 = pneg %p156
        %p424 = pneg %p180
        %p425 = pneg %p177
        %p426 = pneg %p201
        %p427 = pneg %p198
        %s428 = sand.u32 %s27, 1
        %s429 = scalar_lea.sflag [#allocation4], %s428
        %s430 = sand.u32 %s214, 1
        %s431 = smul.addr %s430, 128
        %s432 = scalar_lea.vmem [#allocation11], %s431
        %p433 = pneg %p227
        %p434 = pneg %p224
        %p435 = pneg %p259
        %p436 = pneg %p256
        %s437 = sand.u32 %s246, 1
        %s438 = scalar_lea.sflag [#allocation5], %s437
        %s439 = sand.u32 %s246, 1
        %s440 = smul.addr %s439, 16
        %s441 = scalar_lea.vmem [#allocation12], %s440
        %s442 = smul.u32 %s32, 2
        %p443 = scmp.eq.s32.totalorder %s33, 0
        %s444 = scalar_select %p443, %s34, 0
        %s445 = sadd.s32 %s442, %s444
        %s446 = smul.u32 2, %s445
        %s447 = smul.u32 2, %s33
        %s448 = smul.u32 %s32, 2
        %s449 = sadd.s32 %s448, %s34
        %s450 = smul.u32 2, %s449
        %s451 = smul.u32 2, %s33
        %s453 = smul.u32 %s32, 2
        %s454 = sadd.s32 %s453, %s34
        %s455 = smul.u32 %s454, 16
        %p456 = scmp.eq.s32.totalorder %s33, 0
        // Predicated region
        $region73: #{tpu_custom_call.1} parent=51 // pred_check
          %p457 = pneg %p456
        $region74: #{tpu_custom_call.1} parent=51 // pred_check_branch
          %459 = sbr.rel (%p457) target = $region76
        $region75: #{tpu_custom_call.1} parent=51 // pred_region
          %v460 = vld [vmem:[%s383] sm:$0xf]
          %v461 = vld [vmem:[%s383 + $0x4] sm:$0xf]
          %v462 = vld [vmem:[#allocation6] sm:$0xff]
          %v463 = vld [vmem:[#allocation6 + $0x8] sm:$0xff]
          %v464 = vld [vmem:[#allocation6 + $0x10] sm:$0xff]
          %v465 = vld [vmem:[#allocation6 + $0x18] sm:$0xff]
          %v466 = vld [vmem:[#allocation6 + $0x20] sm:$0xff]
          %v467 = vld [vmem:[#allocation6 + $0x28] sm:$0xff]
          %v468 = vld [vmem:[#allocation6 + $0x30] sm:$0xff]
          %v469 = vld [vmem:[#allocation6 + $0x38] sm:$0xff]
          %v470 = vld [vmem:[#allocation6 + $0x40] sm:$0xff]
          %v471 = vld [vmem:[#allocation6 + $0x48] sm:$0xff]
          %v472 = vld [vmem:[#allocation6 + $0x50] sm:$0xff]
          %v473 = vld [vmem:[#allocation6 + $0x58] sm:$0xff]
          %v474 = vld [vmem:[%s2] sm:$0x3]
          %v476 = vlaneseq
          %v477 = vshrl.u32 %v476, 7
          %v478 = vsub.s32 0, %v477
          %v479 = vrot.slane %v474, %v478
          %v480 = vlaneseq
          %v481 = vshrl.u32 %v480, 7
          %v482 = vsub.s32 1, %v481
          %v483 = vrot.slane %v474, %v482
          %v488 = vunpack.c.l.b16 %v460
          %v489 = vunpack.c.l.b16 %v461
          %v490 = vpack.c.b16 %v489, %v488
          %v503 = vunpack.c.l.b16 %v462
          %v504 = vunpack.c.h.b16 %v462
          %v505 = vunpack.c.l.b16 %v463
          %v506 = vunpack.c.h.b16 %v463
          %v507 = vunpack.c.l.b16 %v464
          %v508 = vunpack.c.h.b16 %v464
          %v509 = vunpack.c.l.b16 %v465
          %v510 = vunpack.c.h.b16 %v465
          %v511 = vunpack.c.l.b16 %v466
          %v512 = vunpack.c.h.b16 %v466
          %v513 = vunpack.c.l.b16 %v467
          %v514 = vunpack.c.h.b16 %v467
          %v515 = vunpack.c.l.b16 %v468
          %v516 = vunpack.c.h.b16 %v468
          %v517 = vunpack.c.l.b16 %v469
          %v518 = vunpack.c.h.b16 %v469
          %v519 = vunpack.c.l.b16 %v470
          %v520 = vunpack.c.h.b16 %v470
          %v521 = vunpack.c.l.b16 %v471
          %v522 = vunpack.c.h.b16 %v471
          %v523 = vunpack.c.l.b16 %v472
          %v524 = vunpack.c.h.b16 %v472
          %v525 = vunpack.c.l.b16 %v473
          %v526 = vunpack.c.h.b16 %v473
          %v527 = vpack.c.b16 %v505, %v503
          %v528 = vpack.c.b16 %v506, %v504
          %v529 = vpack.c.b16 %v509, %v507
          %v530 = vpack.c.b16 %v510, %v508
          %v531 = vpack.c.b16 %v513, %v511
          %v532 = vpack.c.b16 %v514, %v512
          %v533 = vpack.c.b16 %v517, %v515
          %v534 = vpack.c.b16 %v518, %v516
          %v535 = vpack.c.b16 %v521, %v519
          %v536 = vpack.c.b16 %v522, %v520
          %v537 = vpack.c.b16 %v525, %v523
          %v538 = vpack.c.b16 %v526, %v524
          %vm551 = vcmask 785408
          %v553 = vsel %vm551, %v490, 0
          %555 = vmatprep.subr.bf16.mxu0 %v528
          %556 = vmatpush1.bf16.msra.mxu0 %v527
          %557 = vmatprep.subr.bf16.mxu0 %v530
          %558 = vmatpush1.bf16.msra.mxu0 %v529
          %559 = vmatprep.subr.bf16.mxu0 %v532
          %560 = vmatpush1.bf16.msra.mxu0 %v531
          %561 = vmatprep.subr.bf16.mxu0 %v534
          %562 = vmatpush1.bf16.msra.mxu0 %v533
          %563 = vmatprep.subr.bf16.mxu0 %v536
          %564 = vmatpush1.bf16.msra.mxu0 %v535
          %565 = vmatprep.subr.bf16.mxu0 %v538
          %566 = vmatpush1.bf16.msra.mxu0 %v537
          %567 = vmatprep.subr.bf16.mxu0 0
          %568 = vmatpush1.bf16.msra.mxu0 0
          %569 = vmatprep.subr.bf16.mxu0 0
          %570 = vmatpush1.bf16.msra.mxu0 0
          %571 = vmatprep.subr.bf16.mxu0 0
          %572 = vmatpush1.bf16.msra.mxu0 0
          %573 = vmatprep.subr.bf16.mxu0 0
          %574 = vmatpush1.bf16.msra.mxu0 0
          %575 = vmatprep.subr.bf16.mxu0 0
          %576 = vmatpush1.bf16.msra.mxu0 0
          %577 = vmatprep.subr.bf16.mxu0 0
          %578 = vmatpush1.bf16.msra.mxu0 0
          %579 = vmatprep.subr.bf16.mxu0 0
          %580 = vmatpush1.bf16.msra.mxu0 0
          %581 = vmatprep.subr.bf16.mxu0 0
          %582 = vmatpush1.bf16.msra.mxu0 0
          %583 = vmatprep.subr.bf16.mxu0 0
          %584 = vmatpush1.bf16.msra.mxu0 0
          %585 = vmatprep.subr.bf16.mxu0 0
          %586 = vmatpush1.bf16.msra.mxu0 0
          %587 = vmatprep.mubr.bf16.mxu0 0
          %588 = vmatmul.mubr.bf16.gmra.mrb[0].mxu0 %v553
          %v589 = vpop.f32.mrb[0].mxu0
          %v590 = vadd.f32 %v479, %v589
          %v591 = vpop.f32.mrb[0].mxu0
          %v592 = vadd.f32 %v483, %v591
          %v593 = vpop.f32.mrb[0].mxu0
          %v594 = vadd.f32 %v479, %v593
          %v595 = vpop.f32.mrb[0].mxu0
          %v596 = vadd.f32 %v483, %v595
          %597 = vdwg.mxu0
          %v598 = vmul.f32 %v590, 0.5
          %v599 = vmul.f32 %v592, 0.5
          %v600 = vmul.f32 %v594, 0.5
          %v601 = vmul.f32 %v596, 0.5
          %v602 = vmul.f32 %v590, 0.70710677
          %v603 = vmul.f32 %v592, 0.70710677
          %v604 = vmul.f32 %v594, 0.70710677
          %v605 = vmul.f32 %v596, 0.70710677
          %v606 = verf.f32.pop %v602
          %v607 = verf.f32.pop %v603
          %v608 = verf.f32.pop %v604
          %v609 = verf.f32.pop %v605
          %v610 = vadd.f32 %v606, 1.0
          %v611 = vadd.f32 %v607, 1.0
          %v612 = vadd.f32 %v608, 1.0
          %v613 = vadd.f32 %v609, 1.0
          %v614 = vmul.f32 %v598, %v610
          %v615 = vmul.f32 %v599, %v611
          %v616 = vmul.f32 %v600, %v612
          %v617 = vmul.f32 %v601, %v613
          %v618 = vpack.c.bf16 %v616, %v614
          %v619 = vpack.c.bf16 %v617, %v615
          %v620 = vld [vmem:[#allocation8] sm:$0xff]
          %v621 = vld [vmem:[#allocation8 + $0x8] sm:$0xff]
          %v622 = vld [vmem:[#allocation8 + $0x10] sm:$0xff]
          %v623 = vld [vmem:[#allocation8 + $0x18] sm:$0xff]
          %v624 = vld [vmem:[#allocation8 + $0x20] sm:$0xff]
          %v625 = vld [vmem:[#allocation8 + $0x28] sm:$0xff]
          %v626 = vld [vmem:[#allocation8 + $0x30] sm:$0xff]
          %v627 = vld [vmem:[#allocation8 + $0x38] sm:$0xff]
          %v628 = vld [vmem:[#allocation8 + $0x40] sm:$0xff]
          %v629 = vld [vmem:[#allocation8 + $0x48] sm:$0xff]
          %v630 = vld [vmem:[#allocation8 + $0x50] sm:$0xff]
          %v631 = vld [vmem:[#allocation8 + $0x58] sm:$0xff]
          %v632 = vld [vmem:[#allocation8 + $0x60] sm:$0xff]
          %v633 = vld [vmem:[#allocation8 + $0x68] sm:$0xff]
          %v634 = vld [vmem:[#allocation8 + $0x70] sm:$0xff]
          %v635 = vld [vmem:[#allocation8 + $0x78] sm:$0xff]
          %v636 = vld [vmem:[#allocation8 + $0x80] sm:$0xff]
          %v637 = vld [vmem:[#allocation8 + $0x88] sm:$0xff]
          %v638 = vld [vmem:[#allocation8 + $0x90] sm:$0xff]
          %v639 = vld [vmem:[#allocation8 + $0x98] sm:$0xff]
          %v640 = vld [vmem:[#allocation8 + $0xa0] sm:$0xff]
          %v641 = vld [vmem:[#allocation8 + $0xa8] sm:$0xff]
          %v642 = vld [vmem:[#allocation8 + $0xb0] sm:$0xff]
          %v643 = vld [vmem:[#allocation8 + $0xb8] sm:$0xff]
          %v644 = vld [vmem:[#allocation8 + $0xc0] sm:$0xff]
          %v645 = vld [vmem:[#allocation8 + $0xc8] sm:$0xff]
          %v646 = vld [vmem:[#allocation8 + $0xd0] sm:$0xff]
          %v647 = vld [vmem:[#allocation8 + $0xd8] sm:$0xff]
          %v648 = vld [vmem:[#allocation8 + $0xe0] sm:$0xff]
          %v649 = vld [vmem:[#allocation8 + $0xe8] sm:$0xff]
          %v650 = vld [vmem:[#allocation8 + $0xf0] sm:$0xff]
          %v651 = vld [vmem:[#allocation8 + $0xf8] sm:$0xff]
          %v652 = vld [vmem:[%s4] sm:$0x3]
          %v654 = vlaneseq
          %v655 = vshrl.u32 %v654, 7
          %v656 = vsub.s32 0, %v655
          %v657 = vrot.slane %v652, %v656
          %v658 = vlaneseq
          %v659 = vshrl.u32 %v658, 7
          %v660 = vsub.s32 1, %v659
          %v661 = vrot.slane %v652, %v660
          %v696 = vunpack.c.l.b16 %v620
          %v697 = vunpack.c.h.b16 %v620
          %v698 = vunpack.c.l.b16 %v621
          %v699 = vunpack.c.h.b16 %v621
          %v700 = vunpack.c.l.b16 %v622
          %v701 = vunpack.c.h.b16 %v622
          %v702 = vunpack.c.l.b16 %v623
          %v703 = vunpack.c.h.b16 %v623
          %v704 = vunpack.c.l.b16 %v624
          %v705 = vunpack.c.h.b16 %v624
          %v706 = vunpack.c.l.b16 %v625
          %v707 = vunpack.c.h.b16 %v625
          %v708 = vunpack.c.l.b16 %v626
          %v709 = vunpack.c.h.b16 %v626
          %v710 = vunpack.c.l.b16 %v627
          %v711 = vunpack.c.h.b16 %v627
          %v712 = vunpack.c.l.b16 %v628
          %v713 = vunpack.c.h.b16 %v628
          %v714 = vunpack.c.l.b16 %v629
          %v715 = vunpack.c.h.b16 %v629
          %v716 = vunpack.c.l.b16 %v630
          %v717 = vunpack.c.h.b16 %v630
          %v718 = vunpack.c.l.b16 %v631
          %v719 = vunpack.c.h.b16 %v631
          %v720 = vunpack.c.l.b16 %v632
          %v721 = vunpack.c.h.b16 %v632
          %v722 = vunpack.c.l.b16 %v633
          %v723 = vunpack.c.h.b16 %v633
          %v724 = vunpack.c.l.b16 %v634
          %v725 = vunpack.c.h.b16 %v634
          %v726 = vunpack.c.l.b16 %v635
          %v727 = vunpack.c.h.b16 %v635
          %v728 = vunpack.c.l.b16 %v636
          %v729 = vunpack.c.h.b16 %v636
          %v730 = vunpack.c.l.b16 %v637
          %v731 = vunpack.c.h.b16 %v637
          %v732 = vunpack.c.l.b16 %v638
          %v733 = vunpack.c.h.b16 %v638
          %v734 = vunpack.c.l.b16 %v639
          %v735 = vunpack.c.h.b16 %v639
          %v736 = vunpack.c.l.b16 %v640
          %v737 = vunpack.c.h.b16 %v640
          %v738 = vunpack.c.l.b16 %v641
          %v739 = vunpack.c.h.b16 %v641
          %v740 = vunpack.c.l.b16 %v642
          %v741 = vunpack.c.h.b16 %v642
          %v742 = vunpack.c.l.b16 %v643
          %v743 = vunpack.c.h.b16 %v643
          %v744 = vunpack.c.l.b16 %v644
          %v745 = vunpack.c.h.b16 %v644
          %v746 = vunpack.c.l.b16 %v645
          %v747 = vunpack.c.h.b16 %v645
          %v748 = vunpack.c.l.b16 %v646
          %v749 = vunpack.c.h.b16 %v646
          %v750 = vunpack.c.l.b16 %v647
          %v751 = vunpack.c.h.b16 %v647
          %v752 = vunpack.c.l.b16 %v648
          %v753 = vunpack.c.h.b16 %v648
          %v754 = vunpack.c.l.b16 %v649
          %v755 = vunpack.c.h.b16 %v649
          %v756 = vunpack.c.l.b16 %v650
          %v757 = vunpack.c.h.b16 %v650
          %v758 = vunpack.c.l.b16 %v651
          %v759 = vunpack.c.h.b16 %v651
          %v760 = vpack.c.b16 %v698, %v696
          %v761 = vpack.c.b16 %v699, %v697
          %v762 = vpack.c.b16 %v702, %v700
          %v763 = vpack.c.b16 %v703, %v701
          %v764 = vpack.c.b16 %v706, %v704
          %v765 = vpack.c.b16 %v707, %v705
          %v766 = vpack.c.b16 %v710, %v708
          %v767 = vpack.c.b16 %v711, %v709
          %v768 = vpack.c.b16 %v714, %v712
          %v769 = vpack.c.b16 %v715, %v713
          %v770 = vpack.c.b16 %v718, %v716
          %v771 = vpack.c.b16 %v719, %v717
          %v772 = vpack.c.b16 %v722, %v720
          %v773 = vpack.c.b16 %v723, %v721
          %v774 = vpack.c.b16 %v726, %v724
          %v775 = vpack.c.b16 %v727, %v725
          %v776 = vpack.c.b16 %v730, %v728
          %v777 = vpack.c.b16 %v731, %v729
          %v778 = vpack.c.b16 %v734, %v732
          %v779 = vpack.c.b16 %v735, %v733
          %v780 = vpack.c.b16 %v738, %v736
          %v781 = vpack.c.b16 %v739, %v737
          %v782 = vpack.c.b16 %v742, %v740
          %v783 = vpack.c.b16 %v743, %v741
          %v784 = vpack.c.b16 %v746, %v744
          %v785 = vpack.c.b16 %v747, %v745
          %v786 = vpack.c.b16 %v750, %v748
          %v787 = vpack.c.b16 %v751, %v749
          %v788 = vpack.c.b16 %v754, %v752
          %v789 = vpack.c.b16 %v755, %v753
          %v790 = vpack.c.b16 %v758, %v756
          %v791 = vpack.c.b16 %v759, %v757
          %824 = vmatprep.subr.bf16.mxu0 %v761
          %825 = vmatpush1.bf16.msra.mxu0 %v760
          %826 = vmatprep.subr.bf16.mxu0 %v763
          %827 = vmatpush1.bf16.msra.mxu0 %v762
          %828 = vmatprep.subr.bf16.mxu0 %v765
          %829 = vmatpush1.bf16.msra.mxu0 %v764
          %830 = vmatprep.subr.bf16.mxu0 %v767
          %831 = vmatpush1.bf16.msra.mxu0 %v766
          %832 = vmatprep.subr.bf16.mxu0 %v769
          %833 = vmatpush1.bf16.msra.mxu0 %v768
          %834 = vmatprep.subr.bf16.mxu0 %v771
          %835 = vmatpush1.bf16.msra.mxu0 %v770
          %836 = vmatprep.subr.bf16.mxu0 %v773
          %837 = vmatpush1.bf16.msra.mxu0 %v772
          %838 = vmatprep.subr.bf16.mxu0 %v775
          %839 = vmatpush1.bf16.msra.mxu0 %v774
          %840 = vmatprep.subr.bf16.mxu0 %v777
          %841 = vmatpush1.bf16.msra.mxu0 %v776
          %842 = vmatprep.subr.bf16.mxu0 %v779
          %843 = vmatpush1.bf16.msra.mxu0 %v778
          %844 = vmatprep.subr.bf16.mxu0 %v781
          %845 = vmatpush1.bf16.msra.mxu0 %v780
          %846 = vmatprep.subr.bf16.mxu0 %v783
          %847 = vmatpush1.bf16.msra.mxu0 %v782
          %848 = vmatprep.subr.bf16.mxu0 %v785
          %849 = vmatpush1.bf16.msra.mxu0 %v784
          %850 = vmatprep.subr.bf16.mxu0 %v787
          %851 = vmatpush1.bf16.msra.mxu0 %v786
          %852 = vmatprep.subr.bf16.mxu0 %v789
          %853 = vmatpush1.bf16.msra.mxu0 %v788
          %854 = vmatprep.subr.bf16.mxu0 %v791
          %855 = vmatpush1.bf16.msra.mxu0 %v790
          %856 = vmatprep.mubr.bf16.mxu0 %v619
          %857 = vmatmul.mubr.bf16.gmra.mrb[0].mxu0 %v618
          %v858 = vpop.f32.mrb[0].mxu0
          %v859 = vadd.f32 %v657, %v858
          %v860 = vpop.f32.mrb[0].mxu0
          %v861 = vadd.f32 %v661, %v860
          %v862 = vpop.f32.mrb[0].mxu0
          %v863 = vadd.f32 %v657, %v862
          %v864 = vpop.f32.mrb[0].mxu0
          %v865 = vadd.f32 %v661, %v864
          %866 = vdwg.mxu0
          %v867 = vmul.f32 %v859, 0.5
          %v868 = vmul.f32 %v861, 0.5
          %v869 = vmul.f32 %v863, 0.5
          %v870 = vmul.f32 %v865, 0.5
          %v871 = vmul.f32 %v859, 0.70710677
          %v872 = vmul.f32 %v861, 0.70710677
          %v873 = vmul.f32 %v863, 0.70710677
          %v874 = vmul.f32 %v865, 0.70710677
          %v875 = verf.f32.pop %v871
          %v876 = verf.f32.pop %v872
          %v877 = verf.f32.pop %v873
          %v878 = verf.f32.pop %v874
          %v879 = vadd.f32 %v875, 1.0
          %v880 = vadd.f32 %v876, 1.0
          %v881 = vadd.f32 %v877, 1.0
          %v882 = vadd.f32 %v878, 1.0
          %v883 = vmul.f32 %v867, %v879
          %v884 = vmul.f32 %v868, %v880
          %v885 = vmul.f32 %v869, %v881
          %v886 = vmul.f32 %v870, %v882
          %v887 = vpack.c.bf16 %v885, %v883
          %v888 = vpack.c.bf16 %v886, %v884
          %v889 = vld [vmem:[#allocation9] sm:$0xf]
          %v890 = vld [vmem:[#allocation9 + $0x4] sm:$0xf]
          %v891 = vld [vmem:[#allocation9 + $0x8] sm:$0xf]
          %v892 = vld [vmem:[#allocation9 + $0xc] sm:$0xf]
          %v893 = vld [vmem:[#allocation9 + $0x10] sm:$0xf]
          %v894 = vld [vmem:[#allocation9 + $0x14] sm:$0xf]
          %v895 = vld [vmem:[#allocation9 + $0x18] sm:$0xf]
          %v896 = vld [vmem:[#allocation9 + $0x1c] sm:$0xf]
          %v897 = vld [vmem:[#allocation9 + $0x20] sm:$0xf]
          %v898 = vld [vmem:[#allocation9 + $0x24] sm:$0xf]
          %v899 = vld [vmem:[#allocation9 + $0x28] sm:$0xf]
          %v900 = vld [vmem:[#allocation9 + $0x2c] sm:$0xf]
          %v901 = vld [vmem:[#allocation9 + $0x30] sm:$0xf]
          %v902 = vld [vmem:[#allocation9 + $0x34] sm:$0xf]
          %v903 = vld [vmem:[#allocation9 + $0x38] sm:$0xf]
          %v904 = vld [vmem:[#allocation9 + $0x3c] sm:$0xf]
          %v905 = vld [vmem:[#allocation9 + $0x40] sm:$0xf]
          %v906 = vld [vmem:[#allocation9 + $0x44] sm:$0xf]
          %v907 = vld [vmem:[#allocation9 + $0x48] sm:$0xf]
          %v908 = vld [vmem:[#allocation9 + $0x4c] sm:$0xf]
          %v909 = vld [vmem:[#allocation9 + $0x50] sm:$0xf]
          %v910 = vld [vmem:[#allocation9 + $0x54] sm:$0xf]
          %v911 = vld [vmem:[#allocation9 + $0x58] sm:$0xf]
          %v912 = vld [vmem:[#allocation9 + $0x5c] sm:$0xf]
          %v913 = vld [vmem:[#allocation9 + $0x60] sm:$0xf]
          %v914 = vld [vmem:[#allocation9 + $0x64] sm:$0xf]
          %v915 = vld [vmem:[#allocation9 + $0x68] sm:$0xf]
          %v916 = vld [vmem:[#allocation9 + $0x6c] sm:$0xf]
          %v917 = vld [vmem:[#allocation9 + $0x70] sm:$0xf]
          %v918 = vld [vmem:[#allocation9 + $0x74] sm:$0xf]
          %v919 = vld [vmem:[#allocation9 + $0x78] sm:$0xf]
          %v920 = vld [vmem:[#allocation9 + $0x7c] sm:$0xf]
          %v921 = vld [vmem:[%s6] sm:$0x1]
          %v923 = vlaneseq
          %v924 = vshrl.u32 %v923, 7
          %v925 = vsub.s32 0, %v924
          %v926 = vrot.slane %v921, %v925
          %v960 = vunpack.c.l.b16 %v889
          %v961 = vunpack.c.l.b16 %v890
          %v962 = vunpack.c.l.b16 %v891
          %v963 = vunpack.c.l.b16 %v892
          %v964 = vunpack.c.l.b16 %v893
          %v965 = vunpack.c.l.b16 %v894
          %v966 = vunpack.c.l.b16 %v895
          %v967 = vunpack.c.l.b16 %v896
          %v968 = vunpack.c.l.b16 %v897
          %v969 = vunpack.c.l.b16 %v898
          %v970 = vunpack.c.l.b16 %v899
          %v971 = vunpack.c.l.b16 %v900
          %v972 = vunpack.c.l.b16 %v901
          %v973 = vunpack.c.l.b16 %v902
          %v974 = vunpack.c.l.b16 %v903
          %v975 = vunpack.c.l.b16 %v904
          %v976 = vunpack.c.l.b16 %v905
          %v977 = vunpack.c.l.b16 %v906
          %v978 = vunpack.c.l.b16 %v907
          %v979 = vunpack.c.l.b16 %v908
          %v980 = vunpack.c.l.b16 %v909
          %v981 = vunpack.c.l.b16 %v910
          %v982 = vunpack.c.l.b16 %v911
          %v983 = vunpack.c.l.b16 %v912
          %v984 = vunpack.c.l.b16 %v913
          %v985 = vunpack.c.l.b16 %v914
          %v986 = vunpack.c.l.b16 %v915
          %v987 = vunpack.c.l.b16 %v916
          %v988 = vunpack.c.l.b16 %v917
          %v989 = vunpack.c.l.b16 %v918
          %v990 = vunpack.c.l.b16 %v919
          %v991 = vunpack.c.l.b16 %v920
          %v992 = vpack.c.b16 %v961, %v960
          %v993 = vpack.c.b16 %v963, %v962
          %v994 = vpack.c.b16 %v965, %v964
          %v995 = vpack.c.b16 %v967, %v966
          %v996 = vpack.c.b16 %v969, %v968
          %v997 = vpack.c.b16 %v971, %v970
          %v998 = vpack.c.b16 %v973, %v972
          %v999 = vpack.c.b16 %v975, %v974
          %v1000 = vpack.c.b16 %v977, %v976
          %v1001 = vpack.c.b16 %v979, %v978
          %v1002 = vpack.c.b16 %v981, %v980
          %v1003 = vpack.c.b16 %v983, %v982
          %v1004 = vpack.c.b16 %v985, %v984
          %v1005 = vpack.c.b16 %v987, %v986
          %v1006 = vpack.c.b16 %v989, %v988
          %v1007 = vpack.c.b16 %v991, %v990
          %1024 = vmatprep.subr.bf16.mxu0 0
          %1025 = vmatpush1.bf16.msra.mxu0 %v992
          %1026 = vmatprep.subr.bf16.mxu0 0
          %1027 = vmatpush1.bf16.msra.mxu0 %v993
          %1028 = vmatprep.subr.bf16.mxu0 0
          %1029 = vmatpush1.bf16.msra.mxu0 %v994
          %1030 = vmatprep.subr.bf16.mxu0 0
          %1031 = vmatpush1.bf16.msra.mxu0 %v995
          %1032 = vmatprep.subr.bf16.mxu0 0
          %1033 = vmatpush1.bf16.msra.mxu0 %v996
          %1034 = vmatprep.subr.bf16.mxu0 0
          %1035 = vmatpush1.bf16.msra.mxu0 %v997
          %1036 = vmatprep.subr.bf16.mxu0 0
          %1037 = vmatpush1.bf16.msra.mxu0 %v998
          %1038 = vmatprep.subr.bf16.mxu0 0
          %1039 = vmatpush1.bf16.msra.mxu0 %v999
          %1040 = vmatprep.subr.bf16.mxu0 0
          %1041 = vmatpush1.bf16.msra.mxu0 %v1000
          %1042 = vmatprep.subr.bf16.mxu0 0
          %1043 = vmatpush1.bf16.msra.mxu0 %v1001
          %1044 = vmatprep.subr.bf16.mxu0 0
          %1045 = vmatpush1.bf16.msra.mxu0 %v1002
          %1046 = vmatprep.subr.bf16.mxu0 0
          %1047 = vmatpush1.bf16.msra.mxu0 %v1003
          %1048 = vmatprep.subr.bf16.mxu0 0
          %1049 = vmatpush1.bf16.msra.mxu0 %v1004
          %1050 = vmatprep.subr.bf16.mxu0 0
          %1051 = vmatpush1.bf16.msra.mxu0 %v1005
          %1052 = vmatprep.subr.bf16.mxu0 0
          %1053 = vmatpush1.bf16.msra.mxu0 %v1006
          %1054 = vmatprep.subr.bf16.mxu0 0
          %1055 = vmatpush1.bf16.msra.mxu0 %v1007
          %1056 = vmatprep.mubr.bf16.mxu0 %v888
          %1057 = vmatmul.mubr.bf16.gmra.mrb[0].mxu0 %v887
          %v1058 = vpop.f32.mrb[0].mxu0
          %v1059 = vadd.f32 %v926, %v1058
          %v1060 = vpop.f32.mrb[0].mxu0
          %v1061 = vpop.f32.mrb[0].mxu0
          %v1062 = vadd.f32 %v926, %v1061
          %v1063 = vpop.f32.mrb[0].mxu0
          %1064 = vdwg.mxu0
          %v1065 = vmul.f32 %v1059, %v1059
          %v1066 = vmul.f32 %v1062, %v1062
          %1067 = vadd.xlane.f32.xlu0 %v1065
          %v1068 = vpop.xlane.xlu0 %1067
          %1069 = vadd.xlane.f32.xlu0 %v1066
          %v1070 = vpop.xlane.xlu0 %1069
          %v1071 = vmax.f32 %v1068, 1e-24
          %v1072 = vmax.f32 %v1070, 1e-24
          %v1073 = vrsqrt.pop %v1071
          %v1074 = vrsqrt.pop %v1072
          %v1075 = vmul.f32 %v1059, %v1073
          %v1076 = vmul.f32 %v1062, %v1074
          %v1077 = vpack.c.bf16 %v1076, %v1075
          %s1078 = sshra.s32 %s455, 4
          %s1079 = sand.u32 %s455, 15
          %s1080 = smul.addr %s1078, 8
          %s1081 = scalar_lea.vmem [#allocation2], %s1080
          %1082 = vst [vmem:[%s1081] sm:$0xff] %v1077
        $region76: #{tpu_custom_call.1} parent=51 // pred_fallthru
          _
        %s1083 = sshra.s32 %s455, 4
        %s1084 = sand.u32 %s455, 15
        %s1085 = smul.addr %s1083, 8
        %s1086 = scalar_lea.vmem [#allocation2], %s1085
        %v1087 = vld [vmem:[%s1086] sm:$0xff]
        %v1088 = vld [vmem:[%s404] sm:$0xff]
        %v1089 = vld [vmem:[%s404 + $0x8] sm:$0xff]
        %v1090 = vld [vmem:[%s404 + $0x10] sm:$0xff]
        %v1091 = vld [vmem:[%s404 + $0x18] sm:$0xff]
        %v1092 = vld [vmem:[%s404 + $0x20] sm:$0xff]
        %v1093 = vld [vmem:[%s404 + $0x28] sm:$0xff]
        %v1094 = vld [vmem:[%s404 + $0x30] sm:$0xff]
        %v1095 = vld [vmem:[%s404 + $0x38] sm:$0xff]
        %v1096 = vld [vmem:[%s404 + $0x40] sm:$0xff]
        %v1097 = vld [vmem:[%s404 + $0x48] sm:$0xff]
        %v1098 = vld [vmem:[%s404 + $0x50] sm:$0xff]
        %v1099 = vld [vmem:[%s404 + $0x58] sm:$0xff]
        %v1100 = vld [vmem:[%s404 + $0x60] sm:$0xff]
        %v1101 = vld [vmem:[%s404 + $0x68] sm:$0xff]
        %v1102 = vld [vmem:[%s404 + $0x70] sm:$0xff]
        %v1103 = vld [vmem:[%s404 + $0x78] sm:$0xff]
        %v1120 = vunpack.c.l.b16 %v1088
        %v1121 = vunpack.c.h.b16 %v1088
        %v1122 = vunpack.c.l.b16 %v1089
        %v1123 = vunpack.c.h.b16 %v1089
        %v1124 = vunpack.c.l.b16 %v1090
        %v1125 = vunpack.c.h.b16 %v1090
        %v1126 = vunpack.c.l.b16 %v1091
        %v1127 = vunpack.c.h.b16 %v1091
        %v1128 = vunpack.c.l.b16 %v1092
        %v1129 = vunpack.c.h.b16 %v1092
        %v1130 = vunpack.c.l.b16 %v1093
        %v1131 = vunpack.c.h.b16 %v1093
        %v1132 = vunpack.c.l.b16 %v1094
        %v1133 = vunpack.c.h.b16 %v1094
        %v1134 = vunpack.c.l.b16 %v1095
        %v1135 = vunpack.c.h.b16 %v1095
        %v1136 = vunpack.c.l.b16 %v1096
        %v1137 = vunpack.c.h.b16 %v1096
        %v1138 = vunpack.c.l.b16 %v1097
        %v1139 = vunpack.c.h.b16 %v1097
        %v1140 = vunpack.c.l.b16 %v1098
        %v1141 = vunpack.c.h.b16 %v1098
        %v1142 = vunpack.c.l.b16 %v1099
        %v1143 = vunpack.c.h.b16 %v1099
        %v1144 = vunpack.c.l.b16 %v1100
        %v1145 = vunpack.c.h.b16 %v1100
        %v1146 = vunpack.c.l.b16 %v1101
        %v1147 = vunpack.c.h.b16 %v1101
        %v1148 = vunpack.c.l.b16 %v1102
        %v1149 = vunpack.c.h.b16 %v1102
        %v1150 = vunpack.c.l.b16 %v1103
        %v1151 = vunpack.c.h.b16 %v1103
        %v1152 = vpack.c.b16 %v1122, %v1120
        %v1153 = vpack.c.b16 %v1123, %v1121
        %v1154 = vpack.c.b16 %v1126, %v1124
        %v1155 = vpack.c.b16 %v1127, %v1125
        %v1156 = vpack.c.b16 %v1130, %v1128
        %v1157 = vpack.c.b16 %v1131, %v1129
        %v1158 = vpack.c.b16 %v1134, %v1132
        %v1159 = vpack.c.b16 %v1135, %v1133
        %v1160 = vpack.c.b16 %v1138, %v1136
        %v1161 = vpack.c.b16 %v1139, %v1137
        %v1162 = vpack.c.b16 %v1142, %v1140
        %v1163 = vpack.c.b16 %v1143, %v1141
        %v1164 = vpack.c.b16 %v1146, %v1144
        %v1165 = vpack.c.b16 %v1147, %v1145
        %v1166 = vpack.c.b16 %v1150, %v1148
        %v1167 = vpack.c.b16 %v1151, %v1149
        %1184 = vmatprep.subr.bf16.mxu0 %v1153
        %1185 = vmatpush1.bf16.msra.mxu0 %v1152
        %1186 = vmatprep.subr.bf16.mxu0 %v1155
        %1187 = vmatpush1.bf16.msra.mxu0 %v1154
        %1188 = vmatprep.subr.bf16.mxu0 %v1157
        %1189 = vmatpush1.bf16.msra.mxu0 %v1156
        %1190 = vmatprep.subr.bf16.mxu0 %v1159
        %1191 = vmatpush1.bf16.msra.mxu0 %v1158
        %1192 = vmatprep.subr.bf16.mxu0 %v1161
        %1193 = vmatpush1.bf16.msra.mxu0 %v1160
        %1194 = vmatprep.subr.bf16.mxu0 %v1163
        %1195 = vmatpush1.bf16.msra.mxu0 %v1162
        %1196 = vmatprep.subr.bf16.mxu0 %v1165
        %1197 = vmatpush1.bf16.msra.mxu0 %v1164
        %1198 = vmatprep.subr.bf16.mxu0 %v1167
        %1199 = vmatpush1.bf16.msra.mxu0 %v1166
        %1200 = vmatprep.subr.bf16.mxu0 0
        %1201 = vmatpush1.bf16.msra.mxu0 0
        %1202 = vmatprep.subr.bf16.mxu0 0
        %1203 = vmatpush1.bf16.msra.mxu0 0
        %1204 = vmatprep.subr.bf16.mxu0 0
        %1205 = vmatpush1.bf16.msra.mxu0 0
        %1206 = vmatprep.subr.bf16.mxu0 0
        %1207 = vmatpush1.bf16.msra.mxu0 0
        %1208 = vmatprep.subr.bf16.mxu0 0
        %1209 = vmatpush1.bf16.msra.mxu0 0
        %1210 = vmatprep.subr.bf16.mxu0 0
        %1211 = vmatpush1.bf16.msra.mxu0 0
        %1212 = vmatprep.subr.bf16.mxu0 0
        %1213 = vmatpush1.bf16.msra.mxu0 0
        %1214 = vmatprep.subr.bf16.mxu0 0
        %1215 = vmatpush1.bf16.msra.mxu0 0
        %1216 = vmatprep.mubr.bf16.mxu0 0
        %1217 = vmatmul.mubr.bf16.gmra.mrb[0].mxu0 %v1087
        %v1218 = vpop.f32.mrb[0].mxu0
        %v1219 = vadd.f32 0.0, %v1218
        %v1220 = vpop.f32.mrb[0].mxu0
        %v1221 = vadd.f32 0.0, %v1220
        %v1222 = vpop.f32.mrb[0].mxu0
        %v1223 = vadd.f32 0.0, %v1222
        %v1224 = vpop.f32.mrb[0].mxu0
        %v1225 = vadd.f32 0.0, %v1224
        %1226 = vdwg.mxu0
        %v1227 = vpack.c.bf16 %v1223, %v1219
        %v1228 = vpack.c.bf16 %v1225, %v1221
        %v1231 = vunpack.c.l.b16 %v1227
        %v1232 = vunpack.c.l.b16 %v1228
        %v1233 = vunpack.c.h.b16 %v1227
        %v1234 = vunpack.c.h.b16 %v1228
        %v1235 = vpack.c.b16 %v1232, %v1231
        %v1236 = vpack.c.b16 %v1234, %v1233
        %1239 = vst [vmem:[%s441] sm:$0xff] %v1235
        %1240 = vst [vmem:[%s441 + $0x8] sm:$0xff] %v1236
        %s1241 = sand.u32 %s246, 1
        %s1242 = scalar_lea.sflag [#allocation5], %s1241
        %s1243 = sand.u32 %s246, 1
        %s1244 = smul.addr %s1243, 16
        %s1245 = scalar_lea.vmem [#allocation12], %s1244
        // Predicated region
        $region77: #{tpu_custom_call.1} parent=51 // pred_check
          %p1246 = pneg %p256
        $region78: #{tpu_custom_call.1} parent=51 // pred_check_branch
          %1248 = sbr.rel (%p1246) target = $region80
        $region79: #{tpu_custom_call.1} parent=51 // pred_region
          %s1249 = smul.u32 %s32, 2
          %s1250 = sadd.s32 %s1249, %s34
          %s1251 = smul.u32 2, %s1250
          %s1252 = smul.u32 2, %s33
          %s1254 = ssub.s32 256, 256
          %1255 = vsyncadd %s1242, %s1254
          %s1256 = smul.addr %s1251, 4
          %s1257 = sadd.s32 %s1252, %s1256
          %s1258 = smul.addr %s1257, 64
          %s1259 = scalar_lea.hbm %s8, %s1258
          %s1260 = sshll.u32 %s1245, 4
          %s1261 = int_to_ptr.vmem [resolvable:$true] %s1260
          %1266 = dma.vmem_to_hbm [thread:$0]  %s1261, 256, %s1259, %s1242, 128, 256, 8
        $region80: #{tpu_custom_call.1} parent=51 // pred_fallthru
          _
      $region52: #{tpu_custom_call.1} parent=5 // pred_fallthru
        _
      %p1267 = scmp.le.s32.totalorder 2, %s22
      // Predicated region
      $region81: #{tpu_custom_call.1} parent=5 // pred_check
        %p1268 = pneg %p1267
      $region82: #{tpu_custom_call.1} parent=5 // pred_check_branch
        %1270 = sbr.rel (%p1268) target = $region84
      $region83: #{tpu_custom_call.1} parent=5 // pred_region
        %s1271 = ssub.s32 %s22, 2
        // Predicated region
        $region85: #{tpu_custom_call.1} parent=83 // pred_check
          %p1272 = pneg %p262
        $region86: #{tpu_custom_call.1} parent=83 // pred_check_branch
          %1274 = sbr.rel (%p1272) target = $region88
        $region87: #{tpu_custom_call.1} parent=83 // pred_region
          %s1275 = sand.u32 %s247, 1
          %s1276 = scalar_lea.sflag [#allocation5], %s1275
          %s1277 = sand.u32 %s247, 1
          %s1278 = smul.addr %s1277, 16
          %s1279 = scalar_lea.vmem [#allocation12], %s1278
          %1280 = dma.done %s1276, 256
        $region88: #{tpu_custom_call.1} parent=83 // pred_fallthru
          _
      $region84: #{tpu_custom_call.1} parent=5 // pred_fallthru
        _
    $region6: #{tpu_custom_call.1} parent=1 // loop_footer
      %s26 = sadd.s32 1, %s22
    $region7: #{tpu_custom_call.1} parent=1 // loop_footer_branch
      %21 = sbr.rel target = $region3
    $region8: #{tpu_custom_call.1} parent=1 // loop_exit
      _
    %1281 = vsyncpa [#allocation4], 1
    %s1282 = scalar_lea.sflag [#allocation4], 1
    %1283 = vsyncpa %s1282, 1
    %1284 = vsyncpa [#allocation7], 1
    %1285 = vsyncpa [#allocation10], 1
    %1286 = vsyncpa [#allocation5], 1
    %s1287 = scalar_lea.sflag [#allocation5], 1
    %1288 = vsyncpa %s1287, 1

</llo_original>
